<compile_context>
chip_gen: v7x
topology: tpu7x:2x2x1
jax: 0.10.0
libtpu: 0.0.40
codegen_flags: <defaults>
</compile_context>

<pallas_src>
import jax
import jax.numpy as jnp
from jax.experimental import pallas as pl
from jax.experimental.pallas import tpu as pltpu

_LANES = 128
_SUBLANES = 8
_TARGET_TILE_BYTES = 4 << 20   # ~4 MiB x-block per grid step
_VMEM_CAP_BYTES = 48 << 20     # stay under v7x's 64 MiB physical VMEM


def _add_kernel(x_ref, b_ref, o_ref):
    # Cast x in-kernel (free on the VPU for a memory-bound op) so mixed-dtype
    # inputs don't pay an extra wrapper-side HBM pass; the (tiny) bias arrives
    # pre-cast to the output dtype and broadcasts via standard jnp rules.
    o_ref[...] = x_ref[...].astype(o_ref.dtype) + b_ref[...]


def _compiler_params(n_axes, x_block_bytes, b_block_bytes):
    # 2 pipeline buffers each for the x input and the output, plus the bias,
    # with ~1.5x headroom.  Floor at 16 MiB, cap well below v7x's 64 MiB.
    need = 2 * (2 * x_block_bytes + b_block_bytes)
    vmem = int(need * 1.5) + (2 << 20)
    vmem = min(max(vmem, 16 << 20), _VMEM_CAP_BYTES)
    return pltpu.CompilerParams(
        dimension_semantics=("parallel",) * n_axes,
        vmem_limit_bytes=vmem,
    )


def _fold_width(n_rows, n_cols):
    """Largest lane width L (multiple of 128, multiple of n_cols) such that a
    free row-major reshape of (n_rows, n_cols) -> (n_rows*n_cols//L, L) is
    exact.  Returns None if no such width exists."""
    if n_cols >= _LANES:
        return None
    total = n_rows * n_cols
    for m in range(8, 0, -1):
        L = m * _LANES
        if L <= total and L % n_cols == 0 and total % L == 0:
            return L
    return None


def _pick_tiles_2d(n_rows, n_cols, itemsize):
    """Row / lane tile sizes for streaming a (n_rows, n_cols) array."""
    target = _TARGET_TILE_BYTES
    # Lane tile: full width when 8 rows of it fit the target (or the width is
    # already <= 128), otherwise a multiple of 128 lanes.
    if n_cols <= _LANES or n_cols * itemsize * _SUBLANES <= target:
        tl = n_cols
    else:
        tl = (target // (_SUBLANES * itemsize)) // _LANES * _LANES
        tl = min(max(tl, _LANES), n_cols)
    # Row tile: multiple of 8 (or the full extent).
    tn = max(1, target // max(1, tl * itemsize))
    if tn < n_rows:
        tn = max(_SUBLANES, (tn // _SUBLANES) * _SUBLANES)
    if tn >= n_rows:
        tn = n_rows
    # Keep the grid length >= 2 when cheaply possible so v7x's 2 TensorCores
    # both get work ("parallel" grid axes are split across cores).
    if tn == n_rows and tl == n_cols and n_rows >= 2 * _SUBLANES:
        half = -(-n_rows // 2)
        tn = -(-half // _SUBLANES) * _SUBLANES
    return tn, tl


def _pick_tiles_3d(N, C, HW, itemsize):
    """Image-count / lane tile sizes for a (N, C, HW) stream (C >= 8)."""
    target = _TARGET_TILE_BYTES
    img_bytes = C * HW * itemsize
    if img_bytes <= target:
        thw = HW
        tn = min(N, max(1, target // img_bytes))
    else:
        # One image exceeds the target: tile the lane (HW) axis so blocks stay
        # ~4 MiB and never approach v7x's VMEM limit.
        tn = 1
        thw = (target // (C * itemsize)) // _LANES * _LANES
        thw = min(max(thw, _LANES), HW)
    # Keep the grid length >= 2 when possible (leading dim needs no alignment).
    if tn == N and thw == HW and N >= 2:
        tn = -(-N // 2)
    return tn, thw


def _streaming_add_2d(x2, brow, out_dtype):
    """x2: (R, W), brow: (1, W) already in out_dtype.  Returns x2 + brow."""
    R, W = x2.shape
    itemsize = jnp.dtype(out_dtype).itemsize
    tn, tl = _pick_tiles_2d(R, W, itemsize)
    return pl.pallas_call(
        _add_kernel,
        out_shape=jax.ShapeDtypeStruct((R, W), out_dtype),
        grid=(pl.cdiv(R, tn), pl.cdiv(W, tl)),
        in_specs=[
            pl.BlockSpec((tn, tl), lambda i, j: (i, j)),
            pl.BlockSpec((1, tl), lambda i, j: (0, j)),
        ],
        out_specs=pl.BlockSpec((tn, tl), lambda i, j: (i, j)),
        compiler_params=_compiler_params(2, tn * tl * itemsize, tl * itemsize),
    )(x2, brow)


def _streaming_add_nchw(x3, b3, out_dtype):
    """x3: (N, C, HW), b3: (1, C, 1) already in out_dtype (C >= 8)."""
    N, C, HW = x3.shape
    itemsize = jnp.dtype(out_dtype).itemsize
    tn, thw = _pick_tiles_3d(N, C, HW, itemsize)
    return pl.pallas_call(
        _add_kernel,
        out_shape=jax.ShapeDtypeStruct((N, C, HW), out_dtype),
        grid=(pl.cdiv(N, tn), pl.cdiv(HW, thw)),
        in_specs=[
            pl.BlockSpec((tn, C, thw), lambda i, j: (i, 0, j)),
            pl.BlockSpec((1, C, 1), lambda i, j: (0, 0, 0)),
        ],
        out_specs=pl.BlockSpec((tn, C, thw), lambda i, j: (i, 0, j)),
        compiler_params=_compiler_params(
            2, tn * C * thw * itemsize, C * itemsize),
    )(x3, b3)


def add_bias(x, bias_param):
    """Forward of AddBias. `bias_param` has shape (C, 1) like the nn.Parameter."""
    C = bias_param.shape[0]
    # TODO(synk): jnp.result_type may differ from torch promotion for exotic
    # integer/float mixes; identical for the float cases this module uses.
    out_dtype = jnp.result_type(x.dtype, bias_param.dtype)
    bias_vec = bias_param.reshape(C).astype(out_dtype)   # tiny cast, negligible

    if x.ndim == 2:
        N, Cx = x.shape
        assert Cx == C
        L = _fold_width(N, C)
        if L is not None:
            # Small C, foldable N: FREE row-major reshape so the lane axis is
            # a multiple of 128 (unmasked stores); bias tiled to one lane row.
            # No HBM transposes.
            x2 = x.reshape(N * C // L, L)
            brow = jnp.tile(bias_vec, L // C).reshape(1, L)
            out = _streaming_add_2d(x2, brow, out_dtype)
            return out.reshape(N, C)
        brow = bias_vec.reshape(1, C)
        return _streaming_add_2d(x, brow, out_dtype)

    elif x.ndim == 4:
        N, Cx, H, W = x.shape
        assert Cx == C
        HW = H * W
        if C < _SUBLANES:
            # C < 8 would pad the sublane axis of a (tn, C, HW) block to 8.
            # Flatten to (N, C*HW) so N is the (dense) sublane axis and C*HW
            # the lane axis; bias pre-expanded to one lane row (tiny vs x).
            x2 = x.reshape(N, C * HW)
            brow = jnp.repeat(bias_vec, HW).reshape(1, C * HW)
            out = _streaming_add_2d(x2, brow, out_dtype)
            return out.reshape(N, C, H, W)
        x3 = x.reshape(N, C, HW)                  # free reshape, lane-dense HW
        b3 = bias_vec.reshape(1, C, 1)
        out3 = _streaming_add_nchw(x3, b3, out_dtype)
        return out3.reshape(N, C, H, W)

    else:
        raise ValueError(f"AddBias expects 2D or 4D input, got {x.ndim}D")


if __name__ == "__main__":
    key = jax.random.PRNGKey(0)
    k_bias, k_x4, k_x2, k_x2b, k_b8, k_x4b = jax.random.split(key, 6)

    C = 4
    # Deterministic parameter init: bias vector (C,) -> stored as (C, 1)
    bias_vec = jax.random.normal(k_bias, (C,), dtype=jnp.float32)
    bias_param = bias_vec[:, None]  # nn.Parameter(bias.unsqueeze(1)), shape (C, 1)

    # 4D (conv-style, NCHW) input, small C -> flattened lane-dense path
    x4 = jax.random.normal(k_x4, (2, C, 16, 16), dtype=jnp.float32)
    out4 = add_bias(x4, bias_param)
    jax.block_until_ready(out4)
    ref4 = x4 + bias_vec.reshape(1, C, 1, 1)
    assert out4.shape == x4.shape
    assert jnp.allclose(out4, ref4, atol=1e-6), "4D AddBias mismatch"

    # 2D (fully-connected-style) input, tiny batch -> plain row-tiled path
    x2 = jax.random.normal(k_x2, (2, C), dtype=jnp.float32)
    out2 = add_bias(x2, bias_param)
    jax.block_until_ready(out2)
    ref2 = x2 + bias_vec.reshape(1, C)
    assert jnp.allclose(out2, ref2, atol=1e-6), "2D AddBias mismatch"

    # 2D input with larger batch -> exercises the free-reshape folded path
    x2b = jax.random.normal(k_x2b, (256, C), dtype=jnp.float32)
    out2b = add_bias(x2b, bias_param)
    jax.block_until_ready(out2b)
    ref2b = x2b + bias_vec.reshape(1, C)
    assert jnp.allclose(out2b, ref2b, atol=1e-6), "2D (large-N) AddBias mismatch"

    # 4D input with C >= 8 and mixed dtype (bf16 x + f32 bias) -> 3D-block path
    # with the in-kernel cast and a length-2 grid.
    C8 = 8
    bias8_vec = jax.random.normal(k_b8, (C8,), dtype=jnp.float32)
    bias8_param = bias8_vec[:, None]
    x4b = jax.random.normal(k_x4b, (2, C8, 16, 16), dtype=jnp.bfloat16)
    out4b = add_bias(x4b, bias8_param)
    jax.block_until_ready(out4b)
    ref4b = x4b.astype(jnp.float32) + bias8_vec.reshape(1, C8, 1, 1)
    assert out4b.dtype == jnp.float32
    assert jnp.allclose(out4b, ref4b, atol=1e-6), "4D mixed-dtype AddBias mismatch"

    print("KERNEL_OK")
</pallas_src>

<mosaic_0001>
module attributes {stable_mosaic.version = 11 : i64} {
  func.func @_add_kernel(%arg0: i32, %arg1: i32, %arg2: memref<2x1024xf32, #tpu.memory_space<vmem>>, %arg3: memref<1x1024xf32, #tpu.memory_space<vmem>>, %arg4: memref<2x1024xf32, #tpu.memory_space<vmem>>) attributes {dimension_semantics = [#tpu.dimension_semantics<parallel>, #tpu.dimension_semantics<parallel>], iteration_bounds = array<i64: 1, 1>, scalar_prefetch = 0 : i64, scratch_operands = 0 : i64, tpu.core_type = #tpu.core_type<tc>, window_params = [{transform_indices = @transform_0, window_bounds = array<i64: 2, 1024>}, {transform_indices = @transform_1, window_bounds = array<i64: 1, 1024>}, {transform_indices = @transform_2, window_bounds = array<i64: 2, 1024>}]} {
    %c0 = arith.constant 0 : index
    %c0_0 = arith.constant 0 : index
    %0 = vector.load %arg2[%c0, %c0_0] : memref<2x1024xf32, #tpu.memory_space<vmem>>, vector<2x1024xf32>
    %c0_1 = arith.constant 0 : index
    %c0_2 = arith.constant 0 : index
    %1 = vector.load %arg3[%c0_1, %c0_2] : memref<1x1024xf32, #tpu.memory_space<vmem>>, vector<1x1024xf32>
    %2 = vector.broadcast %1 : vector<1x1024xf32> to vector<2x1024xf32>
    %3 = arith.addf %0, %2 : vector<2x1024xf32>
    %c0_3 = arith.constant 0 : index
    %c0_4 = arith.constant 0 : index
    %4 = vector.load %arg4[%c0_3, %c0_4] : memref<2x1024xf32, #tpu.memory_space<vmem>>, vector<2x1024xf32>
    tpu.vector_store %arg4[%c0_3, %c0_4], %3 {strides = array<i32>} : memref<2x1024xf32, #tpu.memory_space<vmem>>, vector<2x1024xf32>,
    return
  }
  func.func @transform_0(%arg0: i32, %arg1: i32) -> (i32, i32) {
    %c0_i32 = arith.constant 0 : i32
    return %arg0, %arg1 : i32, i32
  }
  func.func @transform_1(%arg0: i32, %arg1: i32) -> (i32, i32) {
    %c0_i32 = arith.constant 0 : i32
    %c0_i32_0 = arith.constant 0 : i32
    return %c0_i32, %arg1 : i32, i32
  }
  func.func @transform_2(%arg0: i32, %arg1: i32) -> (i32, i32) {
    %c0_i32 = arith.constant 0 : i32
    return %arg0, %arg1 : i32, i32
  }
}

</mosaic_0001>

<llo_original>
// kernel: tpu_custom_call.1
$region0: #{tpu_custom_call.1}
  #allocation0 [shape = 'u32[]', space=smem, size = 0x4, offset = 0x4, fixed_abs, tag = 'smem constant byte address 0x4 - core index']
  #allocation1 [shape = 'u32[144,128]{1,0:T(1,128)}', space=vmem, size = 0x12000, scoped, tag = 'internal scratch']
  %s0 = inlined_call_operand.hbm [shape: f32[2,1024], index: 0, kind: input, shape index: {}]
  %s1 = inlined_call_operand.hbm [shape: f32[1,1024], index: 1, kind: input, shape index: {}]
  %s2 = inlined_call_operand.hbm [shape: f32[2,1024], index: 2, kind: output, shape index: {}]
  %s3 = sld [smem:[#allocation0]]
  $region26: #{tpu_custom_call.1} parent=0
    _
  %s5 = ssub.s32 1, %s3
  %s6 = scalar_select 0, %s5, %s3
  $region1: #{tpu_custom_call.1} parent=0
    #allocation2 [shape = 'u8[8192]{0}', space=vmem, size = 0x2000, scoped, tag = 'input window, operand 0, single buffered']
    #allocation3 [shape = 's32[1]{0}', space=sflag, size = 0x4, scoped, tag = 'scoped memory for tpu_custom_call.1']
    #allocation4 [shape = 's32[1]{0}', space=sflag, size = 0x4, scoped, tag = 'scoped memory for tpu_custom_call.1']
    #allocation5 [shape = 'u8[4096]{0}', space=vmem, size = 0x1000, scoped, tag = 'input window, operand 1, single buffered']
    #allocation6 [shape = 's32[1]{0}', space=sflag, size = 0x4, scoped, tag = 'scoped memory for tpu_custom_call.1']
    #allocation7 [shape = 'u8[8192]{0}', space=vmem, size = 0x2000, scoped, tag = 'output window, operand 0, single buffered']
    %7 = vsyncpa [#allocation3], 0
    %8 = vsyncpa [#allocation6], 0
    %9 = vsyncpa [#allocation4], 0
    // Predicated region
    $region2: #{tpu_custom_call.1} parent=1 // pred_check
      _
    $region3: #{tpu_custom_call.1} parent=1 // pred_check_branch
      %11 = sbr.rel (0) target = $region5
    $region4: #{tpu_custom_call.1} parent=1 // pred_region
      %s13 = ssub.s32 256, 256
      %14 = vsyncadd [#allocation3], %s13
      %s16 = sshll.u32 [#allocation2], 4
      %s17 = int_to_ptr.vmem [resolvable:$true] %s16
      %19 = dma.hbm_to_vmem [thread:$0]  %s0, 256, %s17, [#allocation3]
    $region5: #{tpu_custom_call.1} parent=1 // pred_fallthru
      _
    // Predicated region
    $region6: #{tpu_custom_call.1} parent=1 // pred_check
      _
    $region7: #{tpu_custom_call.1} parent=1 // pred_check_branch
      %21 = sbr.rel (0) target = $region9
    $region8: #{tpu_custom_call.1} parent=1 // pred_region
      %s23 = ssub.s32 128, 128
      %24 = vsyncadd [#allocation6], %s23
      %s26 = sshll.u32 [#allocation5], 4
      %s27 = int_to_ptr.vmem [resolvable:$true] %s26
      %29 = dma.hbm_to_vmem [thread:$0]  %s1, 128, %s27, [#allocation6]
    $region9: #{tpu_custom_call.1} parent=1 // pred_fallthru
      _
    // Predicated region
    $region10: #{tpu_custom_call.1} parent=1 // pred_check
      _
    $region11: #{tpu_custom_call.1} parent=1 // pred_check_branch
      %31 = sbr.rel (0) target = $region13
    $region12: #{tpu_custom_call.1} parent=1 // pred_region
      %32 = dma.done [#allocation3], 256
    $region13: #{tpu_custom_call.1} parent=1 // pred_fallthru
      _
    // Predicated region
    $region14: #{tpu_custom_call.1} parent=1 // pred_check
      _
    $region15: #{tpu_custom_call.1} parent=1 // pred_check_branch
      %34 = sbr.rel (0) target = $region17
    $region16: #{tpu_custom_call.1} parent=1 // pred_region
      %35 = dma.done [#allocation6], 128
    $region17: #{tpu_custom_call.1} parent=1 // pred_fallthru
      _
    %v36 = vld [vmem:[#allocation2] sm:$0xff]
    %v37 = vld [vmem:[#allocation2 + $0x8] sm:$0xff]
    %v38 = vld [vmem:[#allocation5] sm:$0xff]
    %v40 = vlaneseq
    %v41 = vshrl.u32 %v40, 7
    %v42 = vsub.s32 0, %v41
    %v43 = vrot.slane %v38, %v42
    %v44 = vlaneseq
    %v45 = vshrl.u32 %v44, 7
    %v46 = vsub.s32 1, %v45
    %v47 = vrot.slane %v38, %v46
    %v48 = vlaneseq
    %v49 = vshrl.u32 %v48, 7
    %v50 = vsub.s32 2, %v49
    %v51 = vrot.slane %v38, %v50
    %v52 = vlaneseq
    %v53 = vshrl.u32 %v52, 7
    %v54 = vsub.s32 3, %v53
    %v55 = vrot.slane %v38, %v54
    %v56 = vlaneseq
    %v57 = vshrl.u32 %v56, 7
    %v58 = vsub.s32 4, %v57
    %v59 = vrot.slane %v38, %v58
    %v60 = vlaneseq
    %v61 = vshrl.u32 %v60, 7
    %v62 = vsub.s32 5, %v61
    %v63 = vrot.slane %v38, %v62
    %v64 = vlaneseq
    %v65 = vshrl.u32 %v64, 7
    %v66 = vsub.s32 6, %v65
    %v67 = vrot.slane %v38, %v66
    %v68 = vlaneseq
    %v69 = vshrl.u32 %v68, 7
    %v70 = vsub.s32 7, %v69
    %v71 = vrot.slane %v38, %v70
    %v72 = vcombine.low %v43, %v47
    %v73 = vcombine.low %v51, %v55
    %v75 = vunpack.c.l.s4 1983009808
    %v76 = vunpack.c.0.s8 %v75
    %v77 = vlaneseq
    %v78 = vshrl.u32 %v77, 7
    %v79 = vsub.s32 %v76, %v78
    %v80 = vrot.slane %v72, %v79
    %v82 = vunpack.c.l.s4 1983009808
    %v83 = vunpack.c.0.s8 %v82
    %v84 = vlaneseq
    %v85 = vshrl.u32 %v84, 7
    %v86 = vsub.s32 %v83, %v85
    %v87 = vrot.slane %v73, %v86
    %v88 = vcombine.low %v80, %v87
    %v89 = vcombine.low %v59, %v63
    %v90 = vcombine.low %v67, %v71
    %v92 = vunpack.c.l.s4 1983009808
    %v93 = vunpack.c.0.s8 %v92
    %v94 = vlaneseq
    %v95 = vshrl.u32 %v94, 7
    %v96 = vsub.s32 %v93, %v95
    %v97 = vrot.slane %v89, %v96
    %v99 = vunpack.c.l.s4 1983009808
    %v100 = vunpack.c.0.s8 %v99
    %v101 = vlaneseq
    %v102 = vshrl.u32 %v101, 7
    %v103 = vsub.s32 %v100, %v102
    %v104 = vrot.slane %v90, %v103
    %v105 = vcombine.low %v97, %v104
    %v108 = vadd.f32 %v36, %v88
    %v109 = vadd.f32 %v37, %v105
    %110 = vst [vmem:[#allocation7] sm:$0xff] %v108
    %111 = vst [vmem:[#allocation7 + $0x8] sm:$0xff] %v109
    // Predicated region
    $region18: #{tpu_custom_call.1} parent=1 // pred_check
      _
    $region19: #{tpu_custom_call.1} parent=1 // pred_check_branch
      %113 = sbr.rel (0) target = $region21
    $region20: #{tpu_custom_call.1} parent=1 // pred_region
      %s115 = ssub.s32 256, 256
      %116 = vsyncadd [#allocation4], %s115
      %s118 = sshll.u32 [#allocation7], 4
      %s119 = int_to_ptr.vmem [resolvable:$true] %s118
      %121 = dma.vmem_to_hbm [thread:$0]  %s119, 256, %s2, [#allocation4]
    $region21: #{tpu_custom_call.1} parent=1 // pred_fallthru
      _
    // Predicated region
    $region22: #{tpu_custom_call.1} parent=1 // pred_check
      _
    $region23: #{tpu_custom_call.1} parent=1 // pred_check_branch
      %123 = sbr.rel (0) target = $region25
    $region24: #{tpu_custom_call.1} parent=1 // pred_region
      %124 = dma.done [#allocation4], 256
    $region25: #{tpu_custom_call.1} parent=1 // pred_fallthru
      _
    %125 = vsyncpa [#allocation3], 1
    %126 = vsyncpa [#allocation6], 1
    %127 = vsyncpa [#allocation4], 1

</llo_original>
